<compile_context>
chip_gen: v5e
topology: v5e:2x2
jax: 0.10.0
libtpu: 0.0.40
codegen_flags: <defaults>
</compile_context>

<pallas_src>
import jax
import jax.numpy as jnp
from jax.experimental import pallas as pl
from jax.experimental.pallas import tpu as pltpu

_EPS = 1e-12  # matches F.normalize default


def _round_up(v, m):
    return (v + m - 1) // m * m


# --------------------------------------------------------------------------
# Kernels
# --------------------------------------------------------------------------
def _nl_kernel_f32_out(x_ref, w_ref, rinv_ref, cinv_ref, o_ref):
    """f32 output: accumulate the matmul directly into the resident o_ref."""
    k = pl.program_id(2)

    @pl.when(k == 0)
    def _():
        o_ref[...] = jnp.zeros_like(o_ref)

    o_ref[...] += jnp.dot(x_ref[...], w_ref[...],
                          preferred_element_type=jnp.float32)

    @pl.when(k == pl.num_programs(2) - 1)
    def _():
        o_ref[...] = o_ref[...] * rinv_ref[...] * cinv_ref[...]


def _nl_kernel_cast_out(x_ref, w_ref, rinv_ref, cinv_ref, o_ref, acc_ref):
    """Non-f32 output: f32 VMEM accumulator, rescale + cast at the last K."""
    k = pl.program_id(2)

    @pl.when(k == 0)
    def _():
        acc_ref[...] = jnp.zeros_like(acc_ref)

    acc_ref[...] += jnp.dot(x_ref[...], w_ref[...],
                            preferred_element_type=jnp.float32)

    @pl.when(k == pl.num_programs(2) - 1)
    def _():
        o_ref[...] = (acc_ref[...] * rinv_ref[...] * cinv_ref[...]
                      ).astype(o_ref.dtype)


# --------------------------------------------------------------------------
# Wrapper
# --------------------------------------------------------------------------
def _inv_norm(sum_sq):
    # rsqrt(max(ss, eps^2)) == 1 / max(norm, eps): F.normalize semantics.
    return jax.lax.rsqrt(jnp.maximum(sum_sq.astype(jnp.float32), _EPS * _EPS))


def normed_linear(x, weight, *, tm=512, tn=1024, tk=1024, out_dtype=None):
    n, in_f = x.shape
    in_f_w, out_f = weight.shape
    assert in_f == in_f_w
    if out_dtype is None:
        out_dtype = x.dtype
    out_dtype = jnp.dtype(out_dtype)
    accum_in_out = out_dtype == jnp.dtype(jnp.float32)

    # ---- tile sizing -------------------------------------------------------
    sub_m = 32 // jnp.dtype(x.dtype).itemsize        # 8 f32 / 16 bf16 / 32 i8
    m_al = _round_up(n, sub_m)
    k_al = _round_up(in_f, 128)
    n_al = _round_up(out_f, 128)

    tm = _round_up(min(tm, m_al), sub_m)
    tk = _round_up(min(tk, k_al), 128)
    tn = _round_up(min(tn, n_al), 128)
    # v6e/v7x MXU is 256x256: avoid odd tiles (e.g. 384) that under-fill it.
    if tn > 256 and tn % 256 != 0:
        tn = _round_up(tn, 256)
    # v7x has 2 TensorCores: if the parallel (M, N) grid would be a single
    # tile, split N (only when it stays padding-free) so both cores get work.
    if m_al <= tm and n_al <= tn and n_al >= 512 and n_al % 512 == 0:
        tn = n_al // 2

    # ---- VMEM budget -------------------------------------------------------
    try:
        vmem_cap = int(pltpu.get_tpu_info().vmem_capacity_bytes)
    except Exception:
        vmem_cap = 64 * 1024 * 1024               # conservative: v7x per-core

    def _tiles_bytes(tm_, tn_, tk_):
        b = 2 * (tm_ * tk_ * x.dtype.itemsize             # x (double-buffered)
                 + tk_ * tn_ * weight.dtype.itemsize      # w (double-buffered)
                 + tm_ * tn_ * out_dtype.itemsize         # out
                 + (tm_ + tn_) * 4)                       # row/col inv norms
        if not accum_in_out:
            b += tm_ * tn_ * 4                            # f32 accumulator
        return b

    budget = int(0.6 * vmem_cap)
    while _tiles_bytes(tm, tn, tk) > budget:
        if tk >= 512 and tk % 256 == 0:
            tk //= 2
        elif tn >= 512 and tn % 256 == 0:
            tn //= 2
        elif tm >= 2 * sub_m and tm % (2 * sub_m) == 0:
            tm //= 2
        else:
            break

    m_pad = _round_up(m_al, tm)
    k_pad = _round_up(k_al, tk)
    n_pad = _round_up(n_al, tn)

    # ---- inverse L2 norms: computed ONCE, outside the K loop ---------------
    xf = x.astype(jnp.float32)
    row_inv = _inv_norm(jnp.sum(xf * xf, axis=1, keepdims=True))      # (n, 1)
    wf = weight.astype(jnp.float32)
    col_inv = _inv_norm(jnp.sum(wf * wf, axis=0, keepdims=True))      # (1, out_f)

    # ---- zero padding (skipped when already aligned) -----------------------
    # Padded rows/cols are zero (contribute 0 to the dot) and their norm
    # factors are 1, so nothing is amplified; padded outputs are sliced off.
    x_p = x if (m_pad, k_pad) == (n, in_f) else jnp.pad(
        x, ((0, m_pad - n), (0, k_pad - in_f)))
    w_p = weight if (k_pad, n_pad) == (in_f, out_f) else jnp.pad(
        weight, ((0, k_pad - in_f), (0, n_pad - out_f)))
    row_inv_p = row_inv if m_pad == n else jnp.pad(
        row_inv, ((0, m_pad - n), (0, 0)), constant_values=1.0)
    col_inv_p = col_inv if n_pad == out_f else jnp.pad(
        col_inv, ((0, 0), (0, n_pad - out_f)), constant_values=1.0)

    grid = (m_pad // tm, n_pad // tn, k_pad // tk)
    kernel = _nl_kernel_f32_out if accum_in_out else _nl_kernel_cast_out
    scratch = [] if accum_in_out else [pltpu.VMEM((tm, tn), jnp.float32)]
    vmem_limit = int(min(max(2 * _tiles_bytes(tm, tn, tk), 16 * 1024 * 1024),
                         int(0.9 * vmem_cap)))

    out = pl.pallas_call(
        kernel,
        out_shape=jax.ShapeDtypeStruct((m_pad, n_pad), out_dtype),
        grid_spec=pltpu.PrefetchScalarGridSpec(
            num_scalar_prefetch=0,
            grid=grid,
            in_specs=[
                pl.BlockSpec((tm, tk), lambda i, j, k: (i, k)),
                pl.BlockSpec((tk, tn), lambda i, j, k: (k, j)),
                pl.BlockSpec((tm, 1), lambda i, j, k: (i, 0)),
                pl.BlockSpec((1, tn), lambda i, j, k: (0, j)),
            ],
            out_specs=pl.BlockSpec((tm, tn), lambda i, j, k: (i, j)),
            scratch_shapes=scratch,
        ),
        compiler_params=pltpu.CompilerParams(
            dimension_semantics=("parallel", "parallel", "arbitrary"),
            vmem_limit_bytes=vmem_limit,
        ),
    )(x_p, w_p, row_inv_p, col_inv_p)

    if (m_pad, n_pad) != (n, out_f):
        out = out[:n, :out_f]
    return out


# --------------------------------------------------------------------------
# Parameter init (mirrors the PyTorch constructor) and pure-JAX reference
# --------------------------------------------------------------------------
def init_normed_linear_weight(key, in_features, out_features):
    # torch.Tensor(in,out).uniform_(-1,1).renorm_(2, 1, 1e-5).mul_(1e5)
    w = jax.random.uniform(key, (in_features, out_features),
                           minval=-1.0, maxval=1.0, dtype=jnp.float32)
    col_norm = jnp.sqrt(jnp.sum(w * w, axis=0, keepdims=True))
    maxnorm = 1e-5
    scale = jnp.where(col_norm > maxnorm, maxnorm / (col_norm + 1e-7), 1.0)
    return w * scale * 1e5


def normed_linear_ref(x, weight):
    xn = x / jnp.maximum(jnp.sqrt(jnp.sum(x * x, axis=1, keepdims=True)), _EPS)
    wn = weight / jnp.maximum(
        jnp.sqrt(jnp.sum(weight * weight, axis=0, keepdims=True)), _EPS)
    return xn @ wn


if __name__ == "__main__":
    key = jax.random.PRNGKey(0)
    k_x1, k_w1, k_x2, k_w2, k_x4, k_w4 = jax.random.split(key, 6)

    # 1) Tiny demo shape (wrapper pads to 128 lanes, single grid step, f32
    #    output accumulated directly in o_ref).
    b1, i1, o1 = 8, 32, 16
    x1 = jax.random.normal(k_x1, (b1, i1), dtype=jnp.float32)
    w1 = init_normed_linear_weight(k_w1, i1, o1)
    out1 = jax.block_until_ready(normed_linear(x1, w1))
    ref1 = normed_linear_ref(x1, w1)
    assert out1.shape == (b1, o1)
    assert jnp.allclose(out1, ref1, atol=1e-5, rtol=1e-5)

    # 2) Multi-tile grid (K accumulation + parallel M/N tiles), no padding.
    b2, i2, o2 = 16, 384, 256
    x2 = jax.random.normal(k_x2, (b2, i2), dtype=jnp.float32)
    w2 = init_normed_linear_weight(k_w2, i2, o2)
    out2 = jax.block_until_ready(
        normed_linear(x2, w2, tm=8, tn=128, tk=128))   # grid = (2, 2, 3)
    ref2 = normed_linear_ref(x2, w2)
    assert out2.shape == (b2, o2)
    assert jnp.allclose(out2, ref2, atol=1e-5, rtol=1e-5)

    # 3) bf16 inputs -> bf16 output (out dtype follows input; f32 accumulator
    #    scratch path, bf16 MXU operands).
    x2b = x2.astype(jnp.bfloat16)
    w2b = w2.astype(jnp.bfloat16)
    out3 = jax.block_until_ready(normed_linear(x2b, w2b))
    ref3 = normed_linear_ref(x2b.astype(jnp.float32), w2b.astype(jnp.float32))
    assert out3.shape == (b2, o2)
    assert out3.dtype == jnp.bfloat16
    assert jnp.allclose(out3.astype(jnp.float32), ref3, atol=2e-2, rtol=2e-2)

    # 4) Small batch + wide output: exercises the "split N so both v7x cores
    #    get a tile" heuristic (grid = (1, 2, 1)) with default tiles.
    b4, i4, o4 = 8, 256, 1024
    x4 = jax.random.normal(k_x4, (b4, i4), dtype=jnp.float32)
    w4 = init_normed_linear_weight(k_w4, i4, o4)
    out4 = jax.block_until_ready(normed_linear(x4, w4))
    ref4 = normed_linear_ref(x4, w4)
    assert out4.shape == (b4, o4)
    assert jnp.allclose(out4, ref4, atol=1e-5, rtol=1e-5)

    print("KERNEL_OK")
</pallas_src>

<mosaic_0001>
module attributes {stable_mosaic.version = 11 : i64} {
  func.func @_nl_kernel_f32_out(%arg0: i32, %arg1: i32, %arg2: i32, %arg3: memref<8x128xf32, #tpu.memory_space<vmem>>, %arg4: memref<128x128xf32, #tpu.memory_space<vmem>>, %arg5: memref<8x1xf32, #tpu.memory_space<vmem>>, %arg6: memref<1x128xf32, #tpu.memory_space<vmem>>, %arg7: memref<8x128xf32, #tpu.memory_space<vmem>>) attributes {dimension_semantics = [#tpu.dimension_semantics<parallel>, #tpu.dimension_semantics<parallel>, #tpu.dimension_semantics<arbitrary>], iteration_bounds = array<i64: 1, 1, 1>, scalar_prefetch = 0 : i64, scratch_operands = 0 : i64, tpu.core_type = #tpu.core_type<tc>, window_params = [{transform_indices = @transform_0, window_bounds = array<i64: 8, 128>}, {transform_indices = @transform_1, window_bounds = array<i64: 128, 128>}, {transform_indices = @transform_2, window_bounds = array<i64: 8, 1>}, {transform_indices = @transform_3, window_bounds = array<i64: 1, 128>}, {transform_indices = @transform_4, window_bounds = array<i64: 8, 128>}]} {
    %c0_i32 = arith.constant 0 : i32
    %0 = arith.cmpi eq, %arg2, %c0_i32 : i32
    %1 = arith.extui %0 : i1 to i32
    %c0_i32_0 = arith.constant 0 : i32
    %2 = arith.cmpi ne, %1, %c0_i32_0 : i32
    scf.if %2 {
      %cst_10 = arith.constant 0.000000e+00 : f32
      %12 = vector.broadcast %cst_10 : f32 to vector<8x128xf32>
      %c0_11 = arith.constant 0 : index
      %c0_12 = arith.constant 0 : index
      %13 = vector.load %arg7[%c0_11, %c0_12] : memref<8x128xf32, #tpu.memory_space<vmem>>, vector<8x128xf32>
      tpu.vector_store %arg7[%c0_11, %c0_12], %12 {strides = array<i32>} : memref<8x128xf32, #tpu.memory_space<vmem>>, vector<8x128xf32>,
    } else {
    }
    %c0 = arith.constant 0 : index
    %c0_1 = arith.constant 0 : index
    %3 = vector.load %arg7[%c0, %c0_1] : memref<8x128xf32, #tpu.memory_space<vmem>>, vector<8x128xf32>
    %c0_2 = arith.constant 0 : index
    %c0_3 = arith.constant 0 : index
    %4 = vector.load %arg3[%c0_2, %c0_3] : memref<8x128xf32, #tpu.memory_space<vmem>>, vector<8x128xf32>
    %c0_4 = arith.constant 0 : index
    %c0_5 = arith.constant 0 : index
    %5 = vector.load %arg4[%c0_4, %c0_5] : memref<128x128xf32, #tpu.memory_space<vmem>>, vector<128x128xf32>
    %cst = arith.constant dense<0.000000e+00> : vector<8x128xf32>
    %6 = tpu.matmul %4, %5, %cst {dimension_numbers = #tpu.dot_dimension_numbers<[1], [0], [0], [1], [0, 0, 1, 1], [], []>} : vector<8x128xf32>, vector<128x128xf32>, vector<8x128xf32> -> vector<8x128xf32>
    %7 = arith.addf %3, %6 : vector<8x128xf32>
    %c0_6 = arith.constant 0 : index
    %c0_7 = arith.constant 0 : index
    %8 = vector.load %arg7[%c0_6, %c0_7] : memref<8x128xf32, #tpu.memory_space<vmem>>, vector<8x128xf32>
    tpu.vector_store %arg7[%c0_6, %c0_7], %7 {strides = array<i32>} : memref<8x128xf32, #tpu.memory_space<vmem>>, vector<8x128xf32>,
    %c0_i32_8 = arith.constant 0 : i32
    %9 = arith.cmpi eq, %arg2, %c0_i32_8 : i32
    %10 = arith.extui %9 : i1 to i32
    %c0_i32_9 = arith.constant 0 : i32
    %11 = arith.cmpi ne, %10, %c0_i32_9 : i32
    scf.if %11 {
      %c0_10 = arith.constant 0 : index
      %c0_11 = arith.constant 0 : index
      %12 = vector.load %arg7[%c0_10, %c0_11] : memref<8x128xf32, #tpu.memory_space<vmem>>, vector<8x128xf32>
      %c0_12 = arith.constant 0 : index
      %c0_13 = arith.constant 0 : index
      %13 = vector.load %arg5[%c0_12, %c0_13] : memref<8x1xf32, #tpu.memory_space<vmem>>, vector<8x1xf32>
      %14 = vector.broadcast %13 : vector<8x1xf32> to vector<8x128xf32>
      %15 = arith.mulf %12, %14 : vector<8x128xf32>
      %c0_14 = arith.constant 0 : index
      %c0_15 = arith.constant 0 : index
      %16 = vector.load %arg6[%c0_14, %c0_15] : memref<1x128xf32, #tpu.memory_space<vmem>>, vector<1x128xf32>
      %17 = vector.broadcast %16 : vector<1x128xf32> to vector<8x128xf32>
      %18 = arith.mulf %15, %17 : vector<8x128xf32>
      %c0_16 = arith.constant 0 : index
      %c0_17 = arith.constant 0 : index
      %19 = vector.load %arg7[%c0_16, %c0_17] : memref<8x128xf32, #tpu.memory_space<vmem>>, vector<8x128xf32>
      tpu.vector_store %arg7[%c0_16, %c0_17], %18 {strides = array<i32>} : memref<8x128xf32, #tpu.memory_space<vmem>>, vector<8x128xf32>,
    } else {
    }
    return
  }
  func.func @transform_0(%arg0: i32, %arg1: i32, %arg2: i32) -> (i32, i32) {
    %c0_i32 = arith.constant 0 : i32
    return %arg0, %arg2 : i32, i32
  }
  func.func @transform_1(%arg0: i32, %arg1: i32, %arg2: i32) -> (i32, i32) {
    %c0_i32 = arith.constant 0 : i32
    return %arg2, %arg1 : i32, i32
  }
  func.func @transform_2(%arg0: i32, %arg1: i32, %arg2: i32) -> (i32, i32) {
    %c0_i32 = arith.constant 0 : i32
    %c0_i32_0 = arith.constant 0 : i32
    return %arg0, %c0_i32 : i32, i32
  }
  func.func @transform_3(%arg0: i32, %arg1: i32, %arg2: i32) -> (i32, i32) {
    %c0_i32 = arith.constant 0 : i32
    %c0_i32_0 = arith.constant 0 : i32
    return %c0_i32, %arg1 : i32, i32
  }
  func.func @transform_4(%arg0: i32, %arg1: i32, %arg2: i32) -> (i32, i32) {
    %c0_i32 = arith.constant 0 : i32
    return %arg0, %arg1 : i32, i32
  }
}

</mosaic_0001>

<llo_original>
// kernel: tpu_custom_call.1
$region0: #{tpu_custom_call.1}
  #allocation0 [shape = 'u32[]', space=smem, size = 0x4, offset = 0x4, fixed_abs, tag = 'smem constant byte address 0x4 - core index']
  #allocation1 [shape = 'u32[72,128]{1,0:T(1,128)}', space=vmem, size = 0x9000, scoped, tag = 'internal scratch']
  %s0 = inlined_call_operand.vmem [shape: f32[8,128], index: 0, kind: input, shape index: {}]
  %s1 = inlined_call_operand.hbm [shape: f32[128,128], index: 1, kind: input, shape index: {}]
  %s2 = inlined_call_operand.vmem [shape: f32[8,1], index: 2, kind: input, shape index: {}]
  %s3 = inlined_call_operand.vmem [shape: f32[1,128], index: 3, kind: input, shape index: {}]
  %s4 = inlined_call_operand.hbm [shape: f32[8,128], index: 4, kind: output, shape index: {}]
  %s5 = sld [smem:[#allocation0]]
  $region38: #{tpu_custom_call.1} parent=0
    _
  %s7 = ssub.s32 1, %s5
  %s8 = scalar_select 0, %s7, %s5
  $region1: #{tpu_custom_call.1} parent=0
    #allocation2 [shape = 'u8[65536]{0}', space=vmem, size = 0x10000, scoped, tag = 'input window, operand 1, single buffered']
    #allocation3 [shape = 's32[1]{0}', space=sflag, size = 0x4, scoped, tag = 'scoped memory for tpu_custom_call.1']
    #allocation4 [shape = 's32[1]{0}', space=sflag, size = 0x4, scoped, tag = 'scoped memory for tpu_custom_call.1']
    #allocation5 [shape = 'u8[4096]{0}', space=vmem, size = 0x1000, scoped, tag = 'output window, operand 0, single buffered']
    %9 = vsyncpa [#allocation3], 0
    %10 = vsyncpa [#allocation4], 0
    // Predicated region
    $region2: #{tpu_custom_call.1} parent=1 // pred_check
      _
    $region3: #{tpu_custom_call.1} parent=1 // pred_check_branch
      %12 = sbr.rel (0) target = $region5
    $region4: #{tpu_custom_call.1} parent=1 // pred_region
      _
    $region5: #{tpu_custom_call.1} parent=1 // pred_fallthru
      _
    // Predicated region
    $region6: #{tpu_custom_call.1} parent=1 // pred_check
      _
    $region7: #{tpu_custom_call.1} parent=1 // pred_check_branch
      %14 = sbr.rel (0) target = $region9
    $region8: #{tpu_custom_call.1} parent=1 // pred_region
      %16 = vsyncadd [#allocation3], 0
      %s17 = sshll.u32 %s1, 4
      %s18 = int_to_ptr.hbm [resolvable:$true] %s17
      %s19 = sshll.u32 [#allocation2], 4
      %s20 = int_to_ptr.vmem [resolvable:$true] %s19
      %25 = dma.hbm_to_vmem [thread:$0]  %s18, 2048, %s20, [#allocation3], 128, 128, 8
    $region9: #{tpu_custom_call.1} parent=1 // pred_fallthru
      _
    // Predicated region
    $region10: #{tpu_custom_call.1} parent=1 // pred_check
      _
    $region11: #{tpu_custom_call.1} parent=1 // pred_check_branch
      %27 = sbr.rel (0) target = $region13
    $region12: #{tpu_custom_call.1} parent=1 // pred_region
      _
    $region13: #{tpu_custom_call.1} parent=1 // pred_fallthru
      _
    // Predicated region
    $region14: #{tpu_custom_call.1} parent=1 // pred_check
      _
    $region15: #{tpu_custom_call.1} parent=1 // pred_check_branch
      %29 = sbr.rel (0) target = $region17
    $region16: #{tpu_custom_call.1} parent=1 // pred_region
      _
    $region17: #{tpu_custom_call.1} parent=1 // pred_fallthru
      _
    // Predicated region
    $region18: #{tpu_custom_call.1} parent=1 // pred_check
      _
    $region19: #{tpu_custom_call.1} parent=1 // pred_check_branch
      %31 = sbr.rel (0) target = $region21
    $region20: #{tpu_custom_call.1} parent=1 // pred_region
      %33 = dma.done [#allocation3], 2048
    $region21: #{tpu_custom_call.1} parent=1 // pred_fallthru
      _
    %p34 = scmp.eq.s32.totalorder 0, 0
    // Predicated region
    $region22: #{tpu_custom_call.1} parent=1 // pred_check
      %p35 = pneg %p34
    $region23: #{tpu_custom_call.1} parent=1 // pred_check_branch
      %37 = sbr.rel (%p35) target = $region25
    $region24: #{tpu_custom_call.1} parent=1 // pred_region
      %38 = vst [vmem:[#allocation5] sm:$0xff] 0.0
    $region25: #{tpu_custom_call.1} parent=1 // pred_fallthru
      _
    %v39 = vld [vmem:[#allocation5] sm:$0xff]
    %v40 = vld [vmem:[%s0] sm:$0xff]
    %v41 = vld [vmem:[#allocation2] sm:$0xff]
    %v42 = vld [vmem:[#allocation2 + $0x8] sm:$0xff]
    %v43 = vld [vmem:[#allocation2 + $0x10] sm:$0xff]
    %v44 = vld [vmem:[#allocation2 + $0x18] sm:$0xff]
    %v45 = vld [vmem:[#allocation2 + $0x20] sm:$0xff]
    %v46 = vld [vmem:[#allocation2 + $0x28] sm:$0xff]
    %v47 = vld [vmem:[#allocation2 + $0x30] sm:$0xff]
    %v48 = vld [vmem:[#allocation2 + $0x38] sm:$0xff]
    %v49 = vld [vmem:[#allocation2 + $0x40] sm:$0xff]
    %v50 = vld [vmem:[#allocation2 + $0x48] sm:$0xff]
    %v51 = vld [vmem:[#allocation2 + $0x50] sm:$0xff]
    %v52 = vld [vmem:[#allocation2 + $0x58] sm:$0xff]
    %v53 = vld [vmem:[#allocation2 + $0x60] sm:$0xff]
    %v54 = vld [vmem:[#allocation2 + $0x68] sm:$0xff]
    %v55 = vld [vmem:[#allocation2 + $0x70] sm:$0xff]
    %v56 = vld [vmem:[#allocation2 + $0x78] sm:$0xff]
    %57 = vmatpush.msra.mxu0 %v56
    %58 = vmatpush.msra.mxu0 %v55
    %59 = vmatpush.msra.mxu0 %v54
    %60 = vmatpush.msra.mxu0 %v53
    %61 = vmatpush.msra.mxu0 %v52
    %62 = vmatpush.msra.mxu0 %v51
    %63 = vmatpush.msra.mxu0 %v50
    %64 = vmatpush.msra.mxu0 %v49
    %65 = vmatpush.msra.mxu0 %v48
    %66 = vmatpush.msra.mxu0 %v47
    %67 = vmatpush.msra.mxu0 %v46
    %68 = vmatpush.msra.mxu0 %v45
    %69 = vmatpush.msra.mxu0 %v44
    %70 = vmatpush.msra.mxu0 %v43
    %71 = vmatpush.msra.mxu0 %v42
    %72 = vmatpush.msra.mxu0 %v41
    %73 = vmatmul.f32.gmra.mxu0 %v40
    %v74 = vpop.f32.mrf.mxu0
    %v75 = vadd.f32 0.0, %v74
    %76 = vdwg.mxu0
    %v77 = vadd.f32 %v39, %v75
    %78 = vst [vmem:[#allocation5] sm:$0xff] %v77
    // Predicated region
    $region26: #{tpu_custom_call.1} parent=1 // pred_check
      %p79 = pneg %p34
    $region27: #{tpu_custom_call.1} parent=1 // pred_check_branch
      %81 = sbr.rel (%p79) target = $region29
    $region28: #{tpu_custom_call.1} parent=1 // pred_region
      %v82 = vld [vmem:[#allocation5] sm:$0xff]
      %v83 = vld [vmem:[%s2] sm:$0xff]
      %85 = vset.pattern.permute.xlu0 0
      %86 = vperm.xlu0 %85, %v83
      %v87 = vpop.permute.xlu0 %86
      %v89 = vmul.f32 %v82, %v87
      %v90 = vld [vmem:[%s3] sm:$0x1]
      %v92 = vperm.slane %v90, 0
      %v94 = vmul.f32 %v89, %v92
      %95 = vst [vmem:[#allocation5] sm:$0xff] %v94
    $region29: #{tpu_custom_call.1} parent=1 // pred_fallthru
      _
    // Predicated region
    $region30: #{tpu_custom_call.1} parent=1 // pred_check
      _
    $region31: #{tpu_custom_call.1} parent=1 // pred_check_branch
      %97 = sbr.rel (0) target = $region33
    $region32: #{tpu_custom_call.1} parent=1 // pred_region
      %99 = vsyncadd [#allocation4], 0
      %s101 = sshll.u32 [#allocation5], 4
      %s102 = int_to_ptr.vmem [resolvable:$true] %s101
      %s103 = sshll.u32 %s4, 4
      %s104 = int_to_ptr.hbm [resolvable:$true] %s103
      %106 = dma.vmem_to_hbm [thread:$0]  %s102, 128, %s104, [#allocation4]
    $region33: #{tpu_custom_call.1} parent=1 // pred_fallthru
      _
    // Predicated region
    $region34: #{tpu_custom_call.1} parent=1 // pred_check
      _
    $region35: #{tpu_custom_call.1} parent=1 // pred_check_branch
      %108 = sbr.rel (0) target = $region37
    $region36: #{tpu_custom_call.1} parent=1 // pred_region
      %110 = dma.done [#allocation4], 128
    $region37: #{tpu_custom_call.1} parent=1 // pred_fallthru
      _
    %111 = vsyncpa [#allocation3], 1
    %112 = vsyncpa [#allocation4], 1

</llo_original>
